<compile_context>
chip_gen: v7x
topology: tpu7x:2x2x1
jax: 0.10.0
libtpu: 0.0.40
codegen_flags: <defaults>
</compile_context>

<pallas_src>
import functools

import jax
import jax.numpy as jnp
from jax.experimental import pallas as pl
from jax.experimental.pallas import tpu as pltpu


def _round_up(x, m):
    return ((x + m - 1) // m) * m


def _cdiv(a, b):
    return -(-a // b)


def _pick_tile(dim, tmax, mult):
    """Full-dim block if it fits under tmax (always a legal Mosaic block),
    otherwise a balanced split rounded up to `mult` (avoids near-doubling the
    padded/ragged extent, e.g. M=264 no longer becomes two 256-row tiles of
    which one is half empty + a 512 pad)."""
    if dim <= tmax:
        return dim
    n_tiles = _cdiv(dim, tmax)
    return _round_up(_cdiv(dim, n_tiles), mult)


def _ensure_two_tiles(dim, tile, mult):
    """v7x has 2 TensorCores sharded over the 'parallel' grid axes; make sure
    the parallel grid has >= 2 iterations when the problem allows it."""
    if _cdiv(dim, tile) == 1 and dim > mult:
        return _round_up(_cdiv(dim, 2), mult)
    return tile


# --------------------------------------------------------------------------- #
# Kernels
# --------------------------------------------------------------------------- #
def _linear_nok_kernel(x_ref, wt_ref, b_ref, o_ref):
    """Single contraction step: o = x @ W^T + b. No accumulator scratch, no
    pl.when branches — used for the weight-resident path and the single-K
    general path."""
    o_ref[...] = (
        jnp.dot(x_ref[...], wt_ref[...], preferred_element_type=jnp.float32)
        + b_ref[...]
    ).astype(o_ref.dtype)


def _linear_ktiled_kernel(x_ref, wt_ref, b_ref, o_ref, acc_ref):
    """(M,N,K)-tiled matmul with an f32 VMEM accumulator; bias added exactly
    once in the k==last finalize branch."""
    k = pl.program_id(2)

    @pl.when(k == 0)
    def _():
        acc_ref[...] = jnp.zeros_like(acc_ref)

    acc_ref[...] += jnp.dot(x_ref[...], wt_ref[...],
                            preferred_element_type=jnp.float32)

    @pl.when(k == pl.num_programs(2) - 1)
    def _():
        o_ref[...] = (acc_ref[...] + b_ref[...]).astype(o_ref.dtype)


# --------------------------------------------------------------------------- #
# Wrapper
# --------------------------------------------------------------------------- #
@functools.partial(
    jax.jit,
    static_argnames=("tm", "tn", "tk", "compute_dtype", "force_pallas",
                     "max_resident_weight_bytes"),
)
def feature_encoder_forward(x, weight, bias, *, tm=512, tn=512, tk=1024,
                            compute_dtype=jnp.bfloat16,
                            force_pallas=False,
                            max_resident_weight_bytes=12 << 20):
    """Pallas equivalent of FeatureEncoder.forward (nn.Linear).

    x:      (..., in_features)
    weight: (hidden_dim, in_features)   -- PyTorch nn.Linear convention
    bias:   (hidden_dim,)
    returns (..., hidden_dim)
    """
    *lead, K = x.shape
    N, K2 = weight.shape
    assert K == K2, "in_features mismatch"
    out_dtype = x.dtype

    x2d = x.reshape(-1, K)
    M = x2d.shape[0]

    # ---- tiny-problem dispatch: pallas_call launch overhead dominates --------
    if not force_pallas and M * N * K < (1 << 20):
        out2d = (jnp.dot(x2d, weight.T) + bias).astype(out_dtype)
        return out2d.reshape(*lead, N)

    cdt = jnp.dtype(compute_dtype) if compute_dtype is not None else jnp.dtype(out_dtype)
    csize = cdt.itemsize
    osize = jnp.dtype(out_dtype).itemsize
    sub = max(8, 32 // csize)            # sublane multiple: 8 f32, 16 bf16, 32 int8

    # MXU operands in compute dtype (bf16 by default), f32 accumulation. Cast in
    # the wrapper so HBM->VMEM DMAs also halve; pre-transpose W to (K, N) once so
    # the kernel is a plain (tm,tk)x(tk,tn) contraction (no per-step transpose).
    xc = x2d.astype(cdt)
    wt = weight.astype(cdt).T                        # (K, N)
    b2 = bias.reshape(1, N).astype(jnp.float32)

    flops = 2 * M * N * K
    vmem_cap = 48 << 20                  # safe on v7x (64 MiB VMEM), fine elsewhere

    tm = _pick_tile(M, tm, sub)

    # ---- weight-resident fast path --------------------------------------------
    w_bytes = K * N * csize + N * 4
    resident = w_bytes <= max_resident_weight_bytes

    if resident:
        budget = 28 << 20                # conservative double-buffered footprint

        def footprint(tm_):
            return 2 * (K * N * csize + N * 4) + 2 * tm_ * (K * csize + N * osize)

        while footprint(tm) > budget and tm > sub:
            tm = max(sub, _round_up(tm // 2, sub))
        resident = footprint(tm) <= budget

    if resident:
        tm = _ensure_two_tiles(M, tm, sub)
        grid = (_cdiv(M, tm),)
        cost = pl.CostEstimate(
            flops=flops, transcendentals=0,
            bytes_accessed=int(csize * (M * K + K * N) + 4 * N + osize * M * N))
        out2d = pl.pallas_call(
            _linear_nok_kernel,
            out_shape=jax.ShapeDtypeStruct((M, N), out_dtype),
            grid_spec=pltpu.PrefetchScalarGridSpec(
                num_scalar_prefetch=0,
                grid=grid,
                in_specs=[
                    pl.BlockSpec((tm, K), lambda i: (i, 0)),   # x: streamed over M
                    pl.BlockSpec((K, N), lambda i: (0, 0)),    # W^T: VMEM-resident
                    pl.BlockSpec((1, N), lambda i: (0, 0)),    # bias: resident
                ],
                out_specs=pl.BlockSpec((tm, N), lambda i: (i, 0)),
            ),
            compiler_params=pltpu.CompilerParams(
                dimension_semantics=("parallel",),
                vmem_limit_bytes=min(
                    vmem_cap,
                    max(int(1.25 * footprint(tm)) + (1 << 20), 16 << 20)),
            ),
            cost_estimate=cost,
        )(xc, wt, b2)
        return out2d.reshape(*lead, N)

    # ---- general tiled path ----------------------------------------------------
    tn = _pick_tile(N, tn, 128)
    tk = _pick_tile(K, tk, 128)
    if _cdiv(M, tm) * _cdiv(N, tn) == 1:
        tm = _ensure_two_tiles(M, tm, sub)

    # Only K needs zero-padding (garbage along K would corrupt valid outputs);
    # ragged boundary blocks along M/N are handled by Pallas (OOB writes masked).
    Kp = _round_up(K, tk)
    if Kp != K:
        xc = jnp.pad(xc, ((0, 0), (0, Kp - K)))
        wt = jnp.pad(wt, ((0, Kp - K), (0, 0)))

    n_m, n_n, n_k = _cdiv(M, tm), _cdiv(N, tn), Kp // tk
    cost = pl.CostEstimate(
        flops=flops, transcendentals=0,
        bytes_accessed=int(csize * (M * Kp * n_n + Kp * N * n_m)   # re-streaming
                           + 4 * N * n_m + osize * M * N))

    if n_k == 1:
        # Single contraction step: skip the f32 accumulator scratch entirely.
        fp = 2 * (tm * Kp * csize + Kp * tn * csize + tm * tn * osize + tn * 4)
        out2d = pl.pallas_call(
            _linear_nok_kernel,
            out_shape=jax.ShapeDtypeStruct((M, N), out_dtype),
            grid_spec=pltpu.PrefetchScalarGridSpec(
                num_scalar_prefetch=0,
                grid=(n_m, n_n),
                in_specs=[
                    pl.BlockSpec((tm, Kp), lambda i, j: (i, 0)),
                    pl.BlockSpec((Kp, tn), lambda i, j: (0, j)),
                    pl.BlockSpec((1, tn), lambda i, j: (0, j)),
                ],
                out_specs=pl.BlockSpec((tm, tn), lambda i, j: (i, j)),
            ),
            compiler_params=pltpu.CompilerParams(
                dimension_semantics=("parallel", "parallel"),
                vmem_limit_bytes=min(vmem_cap,
                                     max(int(1.25 * fp) + (1 << 20), 16 << 20)),
            ),
            cost_estimate=cost,
        )(xc, wt, b2)
    else:
        fp = (2 * (tm * tk * csize + tk * tn * csize + tm * tn * osize + tn * 4)
              + tm * tn * 4)
        out2d = pl.pallas_call(
            _linear_ktiled_kernel,
            out_shape=jax.ShapeDtypeStruct((M, N), out_dtype),
            grid_spec=pltpu.PrefetchScalarGridSpec(
                num_scalar_prefetch=0,
                grid=(n_m, n_n, n_k),
                in_specs=[
                    pl.BlockSpec((tm, tk), lambda i, j, k: (i, k)),
                    pl.BlockSpec((tk, tn), lambda i, j, k: (k, j)),
                    pl.BlockSpec((1, tn), lambda i, j, k: (0, j)),
                ],
                out_specs=pl.BlockSpec((tm, tn), lambda i, j, k: (i, j)),
                scratch_shapes=[pltpu.VMEM((tm, tn), jnp.float32)],
            ),
            compiler_params=pltpu.CompilerParams(
                dimension_semantics=("parallel", "parallel", "arbitrary"),
                vmem_limit_bytes=min(vmem_cap,
                                     max(int(1.25 * fp) + (1 << 20), 16 << 20)),
            ),
            cost_estimate=cost,
        )(xc, wt, b2)

    return out2d.reshape(*lead, N)


# --------------------------------------------------------------------------- #
# Self-test
# --------------------------------------------------------------------------- #
if __name__ == "__main__":
    key = jax.random.PRNGKey(0)
    k1, k2, k3, k4, k5, k6 = jax.random.split(key, 6)

    # ---- Test 1: module's nominal tiny shapes, f32 compute, forced Pallas path
    batch, in_features, hidden_dim = 8, 16, 32
    x = jax.random.normal(k1, (batch, in_features), dtype=jnp.float32)
    bound = 1.0 / (in_features ** 0.5)
    w = jax.random.uniform(k2, (hidden_dim, in_features),
                           minval=-bound, maxval=bound, dtype=jnp.float32)
    b = jax.random.uniform(k3, (hidden_dim,),
                           minval=-bound, maxval=bound, dtype=jnp.float32)
    out1 = feature_encoder_forward(x, w, b, compute_dtype=jnp.float32,
                                   force_pallas=True)
    jax.block_until_ready(out1)
    ref1 = x @ w.T + b
    assert out1.shape == (batch, hidden_dim)
    # Tolerance covers possible MXU pass-structure differences vs XLA's default.
    assert jnp.allclose(out1, ref1, atol=2e-2, rtol=2e-2)

    # ---- Test 2: larger shapes, default config (bf16 MXU + weight-resident path)
    M2, K2_, N2 = 512, 256, 384
    x2 = jax.random.normal(k4, (M2, K2_), dtype=jnp.float32)
    bound2 = 1.0 / (K2_ ** 0.5)
    w2 = jax.random.uniform(k5, (N2, K2_),
                            minval=-bound2, maxval=bound2, dtype=jnp.float32)
    b2v = jax.random.uniform(k6, (N2,),
                             minval=-bound2, maxval=bound2, dtype=jnp.float32)
    out2 = feature_encoder_forward(x2, w2, b2v)      # bf16 default, resident path
    jax.block_until_ready(out2)
    ref2_bf16 = (jnp.dot(x2.astype(jnp.bfloat16), w2.astype(jnp.bfloat16).T,
                         preferred_element_type=jnp.float32) + b2v)
    assert out2.shape == (M2, N2)
    assert jnp.allclose(out2, ref2_bf16, atol=2e-2, rtol=2e-2)

    # ---- Test 3: force the general K-tiled accumulator path (f32 compute)
    out3 = feature_encoder_forward(x2, w2, b2v, tm=128, tn=128, tk=128,
                                   compute_dtype=jnp.float32,
                                   max_resident_weight_bytes=0)
    jax.block_until_ready(out3)
    ref3 = x2 @ w2.T + b2v
    assert out3.shape == (M2, N2)
    assert jnp.allclose(out3, ref3, atol=2e-2, rtol=2e-2)

    print("KERNEL_OK")
</pallas_src>

<mosaic_0001>
module attributes {stable_mosaic.version = 11 : i64} {
  func.func @_linear_nok_kernel(%arg0: i32, %arg1: memref<8x16xf32, #tpu.memory_space<vmem>>, %arg2: memref<16x32xf32, #tpu.memory_space<vmem>>, %arg3: memref<1x32xf32, #tpu.memory_space<vmem>>, %arg4: memref<8x32xf32, #tpu.memory_space<vmem>>) attributes {dimension_semantics = [#tpu.dimension_semantics<parallel>], iteration_bounds = array<i64: 1>, scalar_prefetch = 0 : i64, scratch_operands = 0 : i64, tpu.core_type = #tpu.core_type<tc>, window_params = [{transform_indices = @transform_0, window_bounds = array<i64: 8, 16>}, {pipeline_mode = #tpu.pipeline_mode<synchronous>, transform_indices = @transform_1, window_bounds = array<i64: 16, 32>}, {pipeline_mode = #tpu.pipeline_mode<synchronous>, transform_indices = @transform_2, window_bounds = array<i64: 1, 32>}, {transform_indices = @transform_3, window_bounds = array<i64: 8, 32>}]} {
    %c0 = arith.constant 0 : index
    %c0_0 = arith.constant 0 : index
    %0 = vector.load %arg1[%c0, %c0_0] : memref<8x16xf32, #tpu.memory_space<vmem>>, vector<8x16xf32>
    %c0_1 = arith.constant 0 : index
    %c0_2 = arith.constant 0 : index
    %1 = vector.load %arg2[%c0_1, %c0_2] : memref<16x32xf32, #tpu.memory_space<vmem>>, vector<16x32xf32>
    %cst = arith.constant dense<0.000000e+00> : vector<8x32xf32>
    %2 = tpu.matmul %0, %1, %cst {dimension_numbers = #tpu.dot_dimension_numbers<[1], [0], [0], [1], [0, 0, 1, 1], [], []>} : vector<8x16xf32>, vector<16x32xf32>, vector<8x32xf32> -> vector<8x32xf32>
    %c0_3 = arith.constant 0 : index
    %c0_4 = arith.constant 0 : index
    %3 = vector.load %arg3[%c0_3, %c0_4] : memref<1x32xf32, #tpu.memory_space<vmem>>, vector<1x32xf32>
    %4 = vector.broadcast %3 : vector<1x32xf32> to vector<8x32xf32>
    %5 = arith.addf %2, %4 : vector<8x32xf32>
    %c0_5 = arith.constant 0 : index
    %c0_6 = arith.constant 0 : index
    %6 = vector.load %arg4[%c0_5, %c0_6] : memref<8x32xf32, #tpu.memory_space<vmem>>, vector<8x32xf32>
    tpu.vector_store %arg4[%c0_5, %c0_6], %5 {strides = array<i32>} : memref<8x32xf32, #tpu.memory_space<vmem>>, vector<8x32xf32>,
    return
  }
  func.func @transform_0(%arg0: i32) -> (i32, i32) {
    %c0_i32 = arith.constant 0 : i32
    %c0_i32_0 = arith.constant 0 : i32
    return %arg0, %c0_i32 : i32, i32
  }
  func.func @transform_1(%arg0: i32) -> (i32, i32) {
    %c0_i32 = arith.constant 0 : i32
    %c0_i32_0 = arith.constant 0 : i32
    %c0_i32_1 = arith.constant 0 : i32
    return %c0_i32, %c0_i32_0 : i32, i32
  }
  func.func @transform_2(%arg0: i32) -> (i32, i32) {
    %c0_i32 = arith.constant 0 : i32
    %c0_i32_0 = arith.constant 0 : i32
    %c0_i32_1 = arith.constant 0 : i32
    return %c0_i32, %c0_i32_0 : i32, i32
  }
  func.func @transform_3(%arg0: i32) -> (i32, i32) {
    %c0_i32 = arith.constant 0 : i32
    %c0_i32_0 = arith.constant 0 : i32
    return %arg0, %c0_i32 : i32, i32
  }
}

</mosaic_0001>

<llo_original>
// kernel: feature_encoder_forward.1
$region0: #{feature_encoder_forward.1}
  #allocation0 [shape = 'u32[]', space=smem, size = 0x4, offset = 0x4, fixed_abs, tag = 'smem constant byte address 0x4 - core index']
  #allocation1 [shape = 'u32[144,128]{1,0:T(1,128)}', space=vmem, size = 0x12000, scoped, tag = 'internal scratch']
  %s0 = inlined_call_operand.hbm [shape: f32[8,16], index: 0, kind: input, shape index: {}]
  %s1 = inlined_call_operand.hbm [shape: f32[16,32], index: 1, kind: input, shape index: {}]
  %s2 = inlined_call_operand.vmem [shape: f32[1,32], index: 2, kind: input, shape index: {}]
  %s3 = inlined_call_operand.hbm [shape: f32[8,32], index: 3, kind: output, shape index: {}]
  %s4 = sld [smem:[#allocation0]]
  $region30: #{feature_encoder_forward.1} parent=0
    _
  %s6 = ssub.s32 1, %s4
  %s7 = scalar_select 0, %s6, %s4
  $region1: #{feature_encoder_forward.1} parent=0
    #allocation2 [shape = 'u8[4096]{0}', space=vmem, size = 0x1000, scoped, tag = 'input window, operand 0, single buffered']
    #allocation3 [shape = 's32[1]{0}', space=sflag, size = 0x4, scoped, tag = 'scoped memory for feature_encoder_forward.1']
    #allocation4 [shape = 's32[1]{0}', space=sflag, size = 0x4, scoped, tag = 'scoped memory for feature_encoder_forward.1']
    #allocation5 [shape = 'u8[8192]{0}', space=vmem, size = 0x2000, scoped, tag = 'input window, operand 1, single buffered']
    #allocation6 [shape = 's32[1]{0}', space=sflag, size = 0x4, scoped, tag = 'scoped memory for feature_encoder_forward.1']
    #allocation7 [shape = 'u8[4096]{0}', space=vmem, size = 0x1000, scoped, tag = 'output window, operand 0, single buffered']
    %8 = vsyncpa [#allocation3], 0
    %9 = vsyncpa [#allocation6], 0
    %10 = vsyncpa [#allocation4], 0
    // Predicated region
    $region2: #{feature_encoder_forward.1} parent=1 // pred_check
      _
    $region3: #{feature_encoder_forward.1} parent=1 // pred_check_branch
      %12 = sbr.rel (0) target = $region5
    $region4: #{feature_encoder_forward.1} parent=1 // pred_region
      %s14 = ssub.s32 128, 128
      %15 = vsyncadd [#allocation3], %s14
      %s17 = sshll.u32 [#allocation2], 4
      %s18 = int_to_ptr.vmem [resolvable:$true] %s17
      %20 = dma.hbm_to_vmem [thread:$0]  %s0, 128, %s18, [#allocation3]
    $region5: #{feature_encoder_forward.1} parent=1 // pred_fallthru
      _
    // Predicated region
    $region6: #{feature_encoder_forward.1} parent=1 // pred_check
      _
    $region7: #{feature_encoder_forward.1} parent=1 // pred_check_branch
      %22 = sbr.rel (0) target = $region9
    $region8: #{feature_encoder_forward.1} parent=1 // pred_region
      %s24 = ssub.s32 256, 256
      %25 = vsyncadd [#allocation6], %s24
      %s26 = sshll.u32 [#allocation5], 4
      %s27 = int_to_ptr.vmem [resolvable:$true] %s26
      %32 = dma.hbm_to_vmem [thread:$0]  %s1, 256, %s27, [#allocation6], 128, 128, 8
    $region9: #{feature_encoder_forward.1} parent=1 // pred_fallthru
      _
    // Predicated region
    $region10: #{feature_encoder_forward.1} parent=1 // pred_check
      _
    $region11: #{feature_encoder_forward.1} parent=1 // pred_check_branch
      %34 = sbr.rel (0) target = $region13
    $region12: #{feature_encoder_forward.1} parent=1 // pred_region
      _
    $region13: #{feature_encoder_forward.1} parent=1 // pred_fallthru
      _
    // Predicated region
    $region14: #{feature_encoder_forward.1} parent=1 // pred_check
      _
    $region15: #{feature_encoder_forward.1} parent=1 // pred_check_branch
      %36 = sbr.rel (0) target = $region17
    $region16: #{feature_encoder_forward.1} parent=1 // pred_region
      %37 = dma.done [#allocation3], 128
    $region17: #{feature_encoder_forward.1} parent=1 // pred_fallthru
      _
    // Predicated region
    $region18: #{feature_encoder_forward.1} parent=1 // pred_check
      _
    $region19: #{feature_encoder_forward.1} parent=1 // pred_check_branch
      %39 = sbr.rel (0) target = $region21
    $region20: #{feature_encoder_forward.1} parent=1 // pred_region
      %40 = dma.done [#allocation6], 256
    $region21: #{feature_encoder_forward.1} parent=1 // pred_fallthru
      _
    %v41 = vld [vmem:[#allocation2] sm:$0xff]
    %v42 = vld [vmem:[#allocation5] sm:$0xff]
    %v43 = vld [vmem:[#allocation5 + $0x8] sm:$0xff]
    %v44 = vld [vmem:[%s2] sm:$0x1]
    %v46 = vlaneseq
    %v47 = vshrl.u32 %v46, 7
    %v48 = vsub.s32 0, %v47
    %v49 = vrot.slane %v44, %v48
    %vm51 = vcmask 130048
    %v53 = vsel %vm51, %v41, 0
    %55 = vmatprep.subr.mxu0 0.0
    %56 = vmatpush1.msra.mxu0 %v42
    %57 = vmatprep.subr.mxu0 0.0
    %58 = vmatpush1.msra.mxu0 %v43
    %59 = vmatprep.subr.mxu0 0.0
    %60 = vmatpush1.msra.mxu0 0.0
    %61 = vmatprep.subr.mxu0 0.0
    %62 = vmatpush1.msra.mxu0 0.0
    %63 = vmatprep.subr.mxu0 0.0
    %64 = vmatpush1.msra.mxu0 0.0
    %65 = vmatprep.subr.mxu0 0.0
    %66 = vmatpush1.msra.mxu0 0.0
    %67 = vmatprep.subr.mxu0 0.0
    %68 = vmatpush1.msra.mxu0 0.0
    %69 = vmatprep.subr.mxu0 0.0
    %70 = vmatpush1.msra.mxu0 0.0
    %71 = vmatprep.subr.mxu0 0.0
    %72 = vmatpush1.msra.mxu0 0.0
    %73 = vmatprep.subr.mxu0 0.0
    %74 = vmatpush1.msra.mxu0 0.0
    %75 = vmatprep.subr.mxu0 0.0
    %76 = vmatpush1.msra.mxu0 0.0
    %77 = vmatprep.subr.mxu0 0.0
    %78 = vmatpush1.msra.mxu0 0.0
    %79 = vmatprep.subr.mxu0 0.0
    %80 = vmatpush1.msra.mxu0 0.0
    %81 = vmatprep.subr.mxu0 0.0
    %82 = vmatpush1.msra.mxu0 0.0
    %83 = vmatprep.subr.mxu0 0.0
    %84 = vmatpush1.msra.mxu0 0.0
    %85 = vmatprep.subr.mxu0 0.0
    %86 = vmatpush1.msra.mxu0 0.0
    %87 = vmatprep.subr.mxu0 0.0
    %88 = vmatpush1.msra.mxu0 0.0
    %89 = vmatprep.subr.mxu0 0.0
    %90 = vmatpush1.msra.mxu0 0.0
    %91 = vmatprep.subr.mxu0 0.0
    %92 = vmatpush1.msra.mxu0 0.0
    %93 = vmatprep.subr.mxu0 0.0
    %94 = vmatpush1.msra.mxu0 0.0
    %95 = vmatprep.subr.mxu0 0.0
    %96 = vmatpush1.msra.mxu0 0.0
    %97 = vmatprep.subr.mxu0 0.0
    %98 = vmatpush1.msra.mxu0 0.0
    %99 = vmatprep.subr.mxu0 0.0
    %100 = vmatpush1.msra.mxu0 0.0
    %101 = vmatprep.subr.mxu0 0.0
    %102 = vmatpush1.msra.mxu0 0.0
    %103 = vmatprep.subr.mxu0 0.0
    %104 = vmatpush1.msra.mxu0 0.0
    %105 = vmatprep.subr.mxu0 0.0
    %106 = vmatpush1.msra.mxu0 0.0
    %107 = vmatprep.subr.mxu0 0.0
    %108 = vmatpush1.msra.mxu0 0.0
    %109 = vmatprep.subr.mxu0 0.0
    %110 = vmatpush1.msra.mxu0 0.0
    %111 = vmatprep.subr.mxu0 0.0
    %112 = vmatpush1.msra.mxu0 0.0
    %113 = vmatprep.subr.mxu0 0.0
    %114 = vmatpush1.msra.mxu0 0.0
    %115 = vmatprep.subr.mxu0 0.0
    %116 = vmatpush1.msra.mxu0 0.0
    %117 = vmatprep.subr.mxu0 0.0
    %118 = vmatpush1.msra.mxu0 0.0
    %119 = vmatprep.mubr.f32.mxu0 0.0
    %120 = vmatmul.mubr.f32.gmra.mrb[0].mxu0 %v53
    %v121 = vpop.f32.mrb[0].mxu0
    %v122 = vadd.f32 %v49, %v121
    %v123 = vpop.f32.mrb[0].mxu0
    %124 = vdwg.mxu0
    %vm125 = vcmask 261120
    %126 = vst.msk [vmem:[#allocation7] sm:$0xff] %vm125, %v122
    // Predicated region
    $region22: #{feature_encoder_forward.1} parent=1 // pred_check
      _
    $region23: #{feature_encoder_forward.1} parent=1 // pred_check_branch
      %128 = sbr.rel (0) target = $region25
    $region24: #{feature_encoder_forward.1} parent=1 // pred_region
      %s130 = ssub.s32 128, 128
      %131 = vsyncadd [#allocation4], %s130
      %s133 = sshll.u32 [#allocation7], 4
      %s134 = int_to_ptr.vmem [resolvable:$true] %s133
      %136 = dma.vmem_to_hbm [thread:$0]  %s134, 128, %s3, [#allocation4]
    $region25: #{feature_encoder_forward.1} parent=1 // pred_fallthru
      _
    // Predicated region
    $region26: #{feature_encoder_forward.1} parent=1 // pred_check
      _
    $region27: #{feature_encoder_forward.1} parent=1 // pred_check_branch
      %138 = sbr.rel (0) target = $region29
    $region28: #{feature_encoder_forward.1} parent=1 // pred_region
      %139 = dma.done [#allocation4], 128
    $region29: #{feature_encoder_forward.1} parent=1 // pred_fallthru
      _
    %140 = vsyncpa [#allocation3], 1
    %141 = vsyncpa [#allocation6], 1
    %142 = vsyncpa [#allocation4], 1

</llo_original>
